<compile_context>
chip_gen: v7x
topology: tpu7x:2x2x1
jax: 0.10.0
libtpu: 0.0.40
codegen_flags: <defaults>
</compile_context>

<pallas_src>
import functools

import jax
import jax.numpy as jnp
from jax.experimental import pallas as pl
from jax.experimental.pallas import tpu as pltpu


def _layernorm_kernel(x_ref, gamma_ref, beta_ref, o_ref, *, epsilon: float):
    # x_ref: (rows_per_block, D) tile in VMEM
    x = x_ref[...].astype(jnp.float32)
    d = x.shape[-1]

    # Reductions in f32 regardless of input dtype.
    mean = jnp.mean(x, axis=-1, keepdims=True)
    centered = x - mean
    # Unbiased variance (divide by d-1), matching torch.Tensor.std() default.
    var = jnp.sum(centered * centered, axis=-1, keepdims=True) * (1.0 / (d - 1))
    std = jnp.sqrt(var)

    denom = std + epsilon                        # (R, 1) column
    inv = pl.reciprocal(denom, approx=True)      # EUP slot, tiny column op
    inv = inv * (2.0 - denom * inv)              # one Newton step -> ~exact, still cheap

    gamma = gamma_ref[...].astype(jnp.float32)   # (1, D), resident across grid steps
    beta = beta_ref[...].astype(jnp.float32)     # (1, D)

    out = centered * inv * gamma + beta
    o_ref[...] = out.astype(o_ref.dtype)


def _choose_rows_per_block(rows: int, d: int, itemsize: int,
                           target_block_bytes: int = 2 * 1024 * 1024,
                           max_buffer_bytes: int = 40 * 1024 * 1024) -> int:
    """Pick a row-tile: ~2 MiB per block, total double-buffered VMEM <= ~40 MiB."""
    row_bytes = max(d * itemsize, 1)
    rpb = max(1, target_block_bytes // row_bytes)
    # input + output, each double-buffered -> ~4 live buffers of this tile
    rpb = min(rpb, max(1, max_buffer_bytes // (4 * row_bytes)))
    rpb = max(8, (rpb // 8) * 8)                 # keep sublane-aligned (multiple of 8)
    # Keep grid length >= 2 so v7x megacore can split the "parallel" axis.
    if rows > 8:
        half_rows = ((rows + 1) // 2 + 7) // 8 * 8
        rpb = min(rpb, max(8, half_rows))
    return rpb


def layer_normalization(x, gamma, beta, *, epsilon: float = 1e-7,
                        rows_per_block: int | None = None):
    """x: (batch, seq, dim); gamma, beta: (dim,)"""
    b, s, d = x.shape
    assert d >= 2, "feature dim must be >= 2 for unbiased std (torch.Tensor.std)"
    rows = b * s
    itemsize = jnp.dtype(x.dtype).itemsize

    if rows_per_block is None:
        rows_per_block = _choose_rows_per_block(rows, d, itemsize)

    x2 = x.reshape(rows, d)
    num_blocks = pl.cdiv(rows, rows_per_block)
    padded_rows = num_blocks * rows_per_block
    if padded_rows != rows:
        # Padded rows produce finite junk (beta) and are sliced off below.
        x2 = jnp.pad(x2, ((0, padded_rows - rows), (0, 0)))

    gamma2 = gamma.reshape(1, d)
    beta2 = beta.reshape(1, d)

    kernel = functools.partial(_layernorm_kernel, epsilon=epsilon)

    out2 = pl.pallas_call(
        kernel,
        out_shape=jax.ShapeDtypeStruct((padded_rows, d), x.dtype),
        grid=(num_blocks,),
        in_specs=[
            pl.BlockSpec((rows_per_block, d), lambda i: (i, 0)),
            pl.BlockSpec((1, d), lambda i: (0, 0)),
            pl.BlockSpec((1, d), lambda i: (0, 0)),
        ],
        out_specs=pl.BlockSpec((rows_per_block, d), lambda i: (i, 0)),
        compiler_params=pltpu.CompilerParams(
            dimension_semantics=("parallel",),
            vmem_limit_bytes=64 * 1024 * 1024,
        ),
    )(x2, gamma2, beta2)

    if padded_rows != rows:
        out2 = out2[:rows]
    return out2.reshape(b, s, d)


if __name__ == "__main__":
    batch, seq, features = 2, 8, 32
    epsilon = 1e-7

    key = jax.random.PRNGKey(0)
    x = jax.random.normal(key, (batch, seq, features), dtype=jnp.float32)

    # Deterministic parameter init, matching nn.Parameter(ones/zeros(features))
    gamma = jnp.ones((features,), dtype=jnp.float32)
    beta = jnp.zeros((features,), dtype=jnp.float32)

    out = layer_normalization(x, gamma, beta, epsilon=epsilon)
    out = jax.block_until_ready(out)

    # Reference check in plain JAX (same math as the torch module)
    mean = jnp.mean(x, axis=-1, keepdims=True)
    std = jnp.sqrt(jnp.sum((x - mean) ** 2, axis=-1, keepdims=True) / (features - 1))
    ref = gamma * (x - mean) / (std + epsilon) + beta

    assert out.shape == (batch, seq, features)
    assert jnp.allclose(out, ref, atol=1e-4, rtol=1e-4), (
        float(jnp.max(jnp.abs(out - ref))))

    print("KERNEL_OK")
</pallas_src>

<mosaic_0001>
module attributes {stable_mosaic.version = 11 : i64} {
  func.func @_layernorm_kernel(%arg0: i32, %arg1: memref<8x32xf32, #tpu.memory_space<vmem>>, %arg2: memref<1x32xf32, #tpu.memory_space<vmem>>, %arg3: memref<1x32xf32, #tpu.memory_space<vmem>>, %arg4: memref<8x32xf32, #tpu.memory_space<vmem>>) attributes {dimension_semantics = [#tpu.dimension_semantics<parallel>], iteration_bounds = array<i64: 2>, scalar_prefetch = 0 : i64, scratch_operands = 0 : i64, tpu.core_type = #tpu.core_type<tc>, window_params = [{transform_indices = @transform_0, window_bounds = array<i64: 8, 32>}, {pipeline_mode = #tpu.pipeline_mode<synchronous>, transform_indices = @transform_1, window_bounds = array<i64: 1, 32>}, {pipeline_mode = #tpu.pipeline_mode<synchronous>, transform_indices = @transform_2, window_bounds = array<i64: 1, 32>}, {transform_indices = @transform_3, window_bounds = array<i64: 8, 32>}]} {
    %c0 = arith.constant 0 : index
    %c0_0 = arith.constant 0 : index
    %0 = vector.load %arg1[%c0, %c0_0] : memref<8x32xf32, #tpu.memory_space<vmem>>, vector<8x32xf32>
    %cst = arith.constant dense<0.000000e+00> : vector<8xf32>
    %1 = vector.multi_reduction <add>, %0, %cst [1] : vector<8x32xf32> to vector<8xf32>
    %2 = vector.shape_cast %1 : vector<8xf32> to vector<8x1xf32>
    %cst_1 = arith.constant 3.200000e+01 : f32
    %3 = vector.broadcast %cst_1 : f32 to vector<8x1xf32>
    %4 = arith.divf %2, %3 : vector<8x1xf32>
    %5 = vector.broadcast %4 : vector<8x1xf32> to vector<8x32xf32>
    %6 = arith.subf %0, %5 : vector<8x32xf32>
    %7 = arith.mulf %6, %6 : vector<8x32xf32>
    %cst_2 = arith.constant dense<0.000000e+00> : vector<8xf32>
    %8 = vector.multi_reduction <add>, %7, %cst_2 [1] : vector<8x32xf32> to vector<8xf32>
    %9 = vector.shape_cast %8 : vector<8xf32> to vector<8x1xf32>
    %cst_3 = arith.constant 0.0322580636 : f32
    %10 = vector.broadcast %cst_3 : f32 to vector<8x1xf32>
    %11 = arith.mulf %9, %10 : vector<8x1xf32>
    %12 = math.sqrt %11 : vector<8x1xf32>
    %cst_4 = arith.constant 1.000000e-07 : f32
    %13 = vector.broadcast %cst_4 : f32 to vector<8x1xf32>
    %14 = arith.addf %12, %13 : vector<8x1xf32>
    %15 = tpu.reciprocal %14 {approx = true} : vector<8x1xf32> -> vector<8x1xf32>
    %16 = arith.mulf %14, %15 : vector<8x1xf32>
    %cst_5 = arith.constant 2.000000e+00 : f32
    %17 = vector.broadcast %cst_5 : f32 to vector<8x1xf32>
    %18 = arith.subf %17, %16 : vector<8x1xf32>
    %19 = arith.mulf %15, %18 : vector<8x1xf32>
    %c0_6 = arith.constant 0 : index
    %c0_7 = arith.constant 0 : index
    %20 = vector.load %arg2[%c0_6, %c0_7] : memref<1x32xf32, #tpu.memory_space<vmem>>, vector<1x32xf32>
    %c0_8 = arith.constant 0 : index
    %c0_9 = arith.constant 0 : index
    %21 = vector.load %arg3[%c0_8, %c0_9] : memref<1x32xf32, #tpu.memory_space<vmem>>, vector<1x32xf32>
    %22 = vector.broadcast %19 : vector<8x1xf32> to vector<8x32xf32>
    %23 = arith.mulf %6, %22 : vector<8x32xf32>
    %24 = vector.broadcast %20 : vector<1x32xf32> to vector<8x32xf32>
    %25 = arith.mulf %23, %24 : vector<8x32xf32>
    %26 = vector.broadcast %21 : vector<1x32xf32> to vector<8x32xf32>
    %27 = arith.addf %25, %26 : vector<8x32xf32>
    %c0_10 = arith.constant 0 : index
    %c0_11 = arith.constant 0 : index
    %28 = vector.load %arg4[%c0_10, %c0_11] : memref<8x32xf32, #tpu.memory_space<vmem>>, vector<8x32xf32>
    tpu.vector_store %arg4[%c0_10, %c0_11], %27 {strides = array<i32>} : memref<8x32xf32, #tpu.memory_space<vmem>>, vector<8x32xf32>,
    return
  }
  func.func @transform_0(%arg0: i32) -> (i32, i32) {
    %c0_i32 = arith.constant 0 : i32
    %c0_i32_0 = arith.constant 0 : i32
    return %arg0, %c0_i32 : i32, i32
  }
  func.func @transform_1(%arg0: i32) -> (i32, i32) {
    %c0_i32 = arith.constant 0 : i32
    %c0_i32_0 = arith.constant 0 : i32
    %c0_i32_1 = arith.constant 0 : i32
    return %c0_i32, %c0_i32_0 : i32, i32
  }
  func.func @transform_2(%arg0: i32) -> (i32, i32) {
    %c0_i32 = arith.constant 0 : i32
    %c0_i32_0 = arith.constant 0 : i32
    %c0_i32_1 = arith.constant 0 : i32
    return %c0_i32, %c0_i32_0 : i32, i32
  }
  func.func @transform_3(%arg0: i32) -> (i32, i32) {
    %c0_i32 = arith.constant 0 : i32
    %c0_i32_0 = arith.constant 0 : i32
    return %arg0, %c0_i32 : i32, i32
  }
}

</mosaic_0001>

<llo_original>
// kernel: tpu_custom_call.1
$region0: #{tpu_custom_call.1}
  #allocation0 [shape = 'u32[]', space=smem, size = 0x4, offset = 0x4, fixed_abs, tag = 'smem constant byte address 0x4 - core index']
  #allocation1 [shape = 'u32[144,128]{1,0:T(1,128)}', space=vmem, size = 0x12000, scoped, tag = 'internal scratch']
  %s0 = inlined_call_operand.hbm [shape: f32[16,32], index: 0, kind: input, shape index: {}]
  %s1 = inlined_call_operand.hbm [shape: f32[1,32], index: 1, kind: input, shape index: {}]
  %s2 = inlined_call_operand.hbm [shape: f32[1,32], index: 2, kind: input, shape index: {}]
  %s3 = inlined_call_operand.hbm [shape: f32[16,32], index: 3, kind: output, shape index: {}]
  %s4 = sld [smem:[#allocation0]]
  $region57: #{tpu_custom_call.1} parent=0
    _
  %s6 = ssub.s32 1, %s4
  %s7 = scalar_select 0, %s6, %s4
  $region1: #{tpu_custom_call.1} parent=0
    #allocation2 [shape = 'u8[8192]{0}', space=vmem, size = 0x2000, scoped, tag = 'input window, operand 0']
    #allocation3 [shape = 's32[2]{0}', space=sflag, size = 0x8, scoped, tag = 'scoped memory for tpu_custom_call.1']
    #allocation4 [shape = 's32[2]{0}', space=sflag, size = 0x8, scoped, tag = 'scoped memory for tpu_custom_call.1']
    #allocation5 [shape = 'u8[512]{0}', space=vmem, size = 0x400, scoped, tag = 'input window, operand 1, single buffered']
    #allocation6 [shape = 's32[1]{0}', space=sflag, size = 0x4, scoped, tag = 'scoped memory for tpu_custom_call.1']
    #allocation7 [shape = 'u8[512]{0}', space=vmem, size = 0x400, scoped, tag = 'input window, operand 2, single buffered']
    #allocation8 [shape = 'u8[8192]{0}', space=vmem, size = 0x2000, scoped, tag = 'output window, operand 0']
    %8 = vsyncpa [#allocation3], 0
    %s9 = scalar_lea.sflag [#allocation3], 1
    %10 = vsyncpa %s9, 0
    %11 = vsyncpa [#allocation6], 0
    %12 = vsyncpa [#allocation4], 0
    %s13 = scalar_lea.sflag [#allocation4], 1
    %14 = vsyncpa %s13, 0
    loop: start=0, step=1, limit=4
    $region2: #{tpu_custom_call.1} parent=1 // loop_pre_header
      _
    $region3: #{tpu_custom_call.1} parent=1 // loop_header
      %s16 = sphi 0, %s20
      %p17 = scmp.ge.s32.totalorder %s16, 4
      %s26 = sphi 0, %s28
      %s29 = sphi 0, %s26
      %s30 = sphi 0, %s29
      %s46 = sphi 0, %s30
      %s50 = sphi 0, %s50
      %s52 = sphi 0, %s50
      %s53 = sphi 0, %s52
      %s67 = sphi 0, %s53
      %s71 = sphi 0, %s71
      %s73 = sphi 0, %s71
      %s74 = sphi 0, %s73
      %s88 = sphi 0, %s74
      %s94 = sphi 0, %s96
      %s97 = sphi 0, %s94
      %s98 = sphi 0, %s97
      %s114 = sphi 0, %s98
    $region4: #{tpu_custom_call.1} parent=1 // loop_header_branch
      %19 = sbr.rel (%p17) target = $region8
    $region5: #{tpu_custom_call.1} parent=1 // loop_body
      %s21 = ssub.s32 %s16, 1
      %s22 = ssub.s32 %s16, 2
      %s23 = sadd.s32 %s16, 1
      %s24 = ssub.s32 %s16, %s23
      %p25 = scmp.eq.s32.totalorder %s24, 0
      %s27 = sadd.s32 %s26, 1
      %s28 = scalar_select %p25, %s26, %s27
      %p31 = pneg %p25
      %p32 = scmp.eq.s32.totalorder %s16, 1
      %p33 = por %p31, %p32
      %p34 = scmp.ne.s32.totalorder %s26, %s29
      %p35 = scmp.eq.s32.totalorder %s16, 0
      %p36 = por %p34, %p35
      %p37 = scmp.ne.s32.totalorder %s26, %s29
      %p38 = scmp.eq.s32.totalorder %s21, 1
      %p39 = por %p37, %p38
      %p40 = scmp.ne.s32.totalorder %s29, %s30
      %p41 = scmp.eq.s32.totalorder %s21, 0
      %p42 = por %p40, %p41
      %p43 = scmp.ne.s32.totalorder %s29, %s30
      %p44 = scmp.eq.s32.totalorder %s22, 1
      %p45 = por %p43, %p44
      %p47 = scmp.ne.s32.totalorder %s30, %s46
      %p48 = scmp.eq.s32.totalorder %s22, 0
      %p49 = por %p47, %p48
      %s51 = sadd.s32 %s50, 1
      %p54 = scmp.eq.s32.totalorder %s16, 1
      %p55 = scmp.ne.s32.totalorder %s50, %s52
      %p56 = scmp.eq.s32.totalorder %s16, 0
      %p57 = por %p55, %p56
      %p58 = scmp.ne.s32.totalorder %s50, %s52
      %p59 = scmp.eq.s32.totalorder %s21, 1
      %p60 = por %p58, %p59
      %p61 = scmp.ne.s32.totalorder %s52, %s53
      %p62 = scmp.eq.s32.totalorder %s21, 0
      %p63 = por %p61, %p62
      %p64 = scmp.ne.s32.totalorder %s52, %s53
      %p65 = scmp.eq.s32.totalorder %s22, 1
      %p66 = por %p64, %p65
      %p68 = scmp.ne.s32.totalorder %s53, %s67
      %p69 = scmp.eq.s32.totalorder %s22, 0
      %p70 = por %p68, %p69
      %s72 = sadd.s32 %s71, 1
      %p75 = scmp.eq.s32.totalorder %s16, 1
      %p76 = scmp.ne.s32.totalorder %s71, %s73
      %p77 = scmp.eq.s32.totalorder %s16, 0
      %p78 = por %p76, %p77
      %p79 = scmp.ne.s32.totalorder %s71, %s73
      %p80 = scmp.eq.s32.totalorder %s21, 1
      %p81 = por %p79, %p80
      %p82 = scmp.ne.s32.totalorder %s73, %s74
      %p83 = scmp.eq.s32.totalorder %s21, 0
      %p84 = por %p82, %p83
      %p85 = scmp.ne.s32.totalorder %s73, %s74
      %p86 = scmp.eq.s32.totalorder %s22, 1
      %p87 = por %p85, %p86
      %p89 = scmp.ne.s32.totalorder %s74, %s88
      %p90 = scmp.eq.s32.totalorder %s22, 0
      %p91 = por %p89, %p90
      %s92 = ssub.s32 %s16, %s23
      %p93 = scmp.eq.s32.totalorder %s92, 0
      %s95 = sadd.s32 %s94, 1
      %s96 = scalar_select %p93, %s94, %s95
      %p99 = pneg %p93
      %p100 = scmp.eq.s32.totalorder %s16, 1
      %p101 = por %p99, %p100
      %p102 = scmp.ne.s32.totalorder %s94, %s97
      %p103 = scmp.eq.s32.totalorder %s16, 0
      %p104 = por %p102, %p103
      %p105 = scmp.ne.s32.totalorder %s94, %s97
      %p106 = scmp.eq.s32.totalorder %s21, 1
      %p107 = por %p105, %p106
      %p108 = scmp.ne.s32.totalorder %s97, %s98
      %p109 = scmp.eq.s32.totalorder %s21, 0
      %p110 = por %p108, %p109
      %p111 = scmp.ne.s32.totalorder %s97, %s98
      %p112 = scmp.eq.s32.totalorder %s22, 1
      %p113 = por %p111, %p112
      %p115 = scmp.ne.s32.totalorder %s98, %s114
      %p116 = scmp.eq.s32.totalorder %s22, 0
      %p117 = por %p115, %p116
      %p118 = scmp.le.s32.totalorder 1, %s16
      %p119 = scmp.lt.s32.totalorder %s16, 3
      %p120 = pnand %p118, %p119
      %p121 = pneg %p120
      // Predicated region
      $region9: #{tpu_custom_call.1} parent=5 // pred_check
        _
      $region10: #{tpu_custom_call.1} parent=5 // pred_check_branch
        %123 = sbr.rel (%p120) target = $region12
      $region11: #{tpu_custom_call.1} parent=5 // pred_region
        %s124 = ssub.s32 %s16, 1
        // Predicated region
        $region13: #{tpu_custom_call.1} parent=11 // pred_check
          %p125 = pneg %p63
        $region14: #{tpu_custom_call.1} parent=11 // pred_check_branch
          %127 = sbr.rel (%p125) target = $region16
        $region15: #{tpu_custom_call.1} parent=11 // pred_region
          %s129 = ssub.s32 16, 16
          %130 = vsyncadd [#allocation6], %s129
          %s132 = sshll.u32 [#allocation5], 4
          %s133 = int_to_ptr.vmem [resolvable:$true] %s132
          %135 = dma.hbm_to_vmem [thread:$0]  %s1, 16, %s133, [#allocation6]
        $region16: #{tpu_custom_call.1} parent=11 // pred_fallthru
          _
        // Predicated region
        $region17: #{tpu_custom_call.1} parent=11 // pred_check
          %p136 = pneg %p84
        $region18: #{tpu_custom_call.1} parent=11 // pred_check_branch
          %138 = sbr.rel (%p136) target = $region20
        $region19: #{tpu_custom_call.1} parent=11 // pred_region
          %s140 = ssub.s32 16, 16
          %141 = vsyncadd [#allocation6], %s140
          %s143 = sshll.u32 [#allocation7], 4
          %s144 = int_to_ptr.vmem [resolvable:$true] %s143
          %146 = dma.hbm_to_vmem [thread:$0]  %s2, 16, %s144, [#allocation6]
        $region20: #{tpu_custom_call.1} parent=11 // pred_fallthru
          _
      $region12: #{tpu_custom_call.1} parent=5 // pred_fallthru
        _
      %p147 = scmp.lt.s32.totalorder %s16, 2
      // Predicated region
      $region21: #{tpu_custom_call.1} parent=5 // pred_check
        %p148 = pneg %p147
      $region22: #{tpu_custom_call.1} parent=5 // pred_check_branch
        %150 = sbr.rel (%p148) target = $region24
      $region23: #{tpu_custom_call.1} parent=5 // pred_region
        // Predicated region
        $region25: #{tpu_custom_call.1} parent=23 // pred_check
          %p151 = pneg %p36
        $region26: #{tpu_custom_call.1} parent=23 // pred_check_branch
          %153 = sbr.rel (%p151) target = $region28
        $region27: #{tpu_custom_call.1} parent=23 // pred_region
          %s154 = sand.u32 %s26, 1
          %s155 = scalar_lea.sflag [#allocation3], %s154
          %s156 = sand.u32 %s26, 1
          %s157 = smul.addr %s156, 8
          %s158 = scalar_lea.vmem [#allocation2], %s157
          %s160 = ssub.s32 128, 128
          %161 = vsyncadd %s155, %s160
          %s162 = smul.addr %s16, 128
          %s163 = scalar_lea.hbm %s0, %s162
          %s165 = sshll.u32 %s158, 4
          %s166 = int_to_ptr.vmem [resolvable:$true] %s165
          %168 = dma.hbm_to_vmem [thread:$0]  %s163, 128, %s166, %s155
        $region28: #{tpu_custom_call.1} parent=23 // pred_fallthru
          _
      $region24: #{tpu_custom_call.1} parent=5 // pred_fallthru
        _
      %p169 = scmp.le.s32.totalorder 1, %s16
      %p170 = scmp.lt.s32.totalorder %s16, 3
      %p171 = pnand %p169, %p170
      %p172 = pneg %p171
      // Predicated region
      $region29: #{tpu_custom_call.1} parent=5 // pred_check
        _
      $region30: #{tpu_custom_call.1} parent=5 // pred_check_branch
        %174 = sbr.rel (%p171) target = $region32
      $region31: #{tpu_custom_call.1} parent=5 // pred_region
        %s175 = ssub.s32 %s16, 1
        %s176 = sand.u32 %s29, 1
        %s177 = scalar_lea.sflag [#allocation3], %s176
        %s178 = sand.u32 %s29, 1
        %s179 = smul.addr %s178, 8
        %s180 = scalar_lea.vmem [#allocation2], %s179
        // Predicated region
        $region33: #{tpu_custom_call.1} parent=31 // pred_check
          %p181 = pneg %p42
        $region34: #{tpu_custom_call.1} parent=31 // pred_check_branch
          %183 = sbr.rel (%p181) target = $region36
        $region35: #{tpu_custom_call.1} parent=31 // pred_region
          %184 = dma.done %s177, 128
        $region36: #{tpu_custom_call.1} parent=31 // pred_fallthru
          _
        // Predicated region
        $region37: #{tpu_custom_call.1} parent=31 // pred_check
          %p185 = pneg %p63
        $region38: #{tpu_custom_call.1} parent=31 // pred_check_branch
          %187 = sbr.rel (%p185) target = $region40
        $region39: #{tpu_custom_call.1} parent=31 // pred_region
          %188 = dma.done [#allocation6], 16
        $region40: #{tpu_custom_call.1} parent=31 // pred_fallthru
          _
        // Predicated region
        $region41: #{tpu_custom_call.1} parent=31 // pred_check
          %p189 = pneg %p84
        $region42: #{tpu_custom_call.1} parent=31 // pred_check_branch
          %191 = sbr.rel (%p189) target = $region44
        $region43: #{tpu_custom_call.1} parent=31 // pred_region
          %192 = dma.done [#allocation6], 16
        $region44: #{tpu_custom_call.1} parent=31 // pred_fallthru
          _
        %s193 = sand.u32 %s29, 1
        %s194 = scalar_lea.sflag [#allocation3], %s193
        %s195 = sand.u32 %s29, 1
        %s196 = smul.addr %s195, 8
        %s197 = scalar_lea.vmem [#allocation2], %s196
        %p198 = pneg %p42
        %p199 = pneg %p39
        %p200 = pneg %p63
        %p201 = pneg %p60
        %p202 = pneg %p84
        %p203 = pneg %p81
        %p204 = pneg %p110
        %p205 = pneg %p107
        %s206 = sand.u32 %s97, 1
        %s207 = scalar_lea.sflag [#allocation4], %s206
        %s208 = sand.u32 %s97, 1
        %s209 = smul.addr %s208, 8
        %s210 = scalar_lea.vmem [#allocation8], %s209
        %v211 = vld [vmem:[%s180] sm:$0xff]
        %vm212 = vcmask 261120
        %v213 = vsel %vm212, %v211, 0.0
        %214 = vadd.xlane.f32.xlu0 %v213
        %v215 = vpop.xlane.xlu0 %214
        %v216 = vrcp.pop 32.0
        %v217 = vmul.f32 %v215, %v216
        %v218 = vsub.f32 %v211, %v217
        %v219 = vmul.f32 %v218, %v218
        %v220 = vsel %vm212, %v219, 0.0
        %221 = vadd.xlane.f32.xlu0 %v220
        %v222 = vpop.xlane.xlu0 %221
        %v223 = vmul.f32 %v222, 0.032258064
        %v224 = vrsqrt.pop %v223
        %v225 = vmul.f32 %v223, %v224
        %vm226 = vcmp.eq.f32.partialorder %v223, inf
        %v227 = vsel %vm226, %v223, %v225
        %vm228 = vcmp.eq.f32.partialorder %v223, 0.0
        %v229 = vand.u32 %v223, 2147483648
        %v230 = vsel %vm228, %v229, %v227
        %v231 = vadd.f32 %v230, 1e-07
        %v232 = vrcp.pop %v231
        %v233 = vmul.f32 %v231, %v232
        %v234 = vsub.f32 2.0, %v233
        %v235 = vmul.f32 %v232, %v234
        %v236 = vld [vmem:[#allocation5] sm:$0x1]
        %v237 = vld [vmem:[#allocation7] sm:$0x1]
        %v238 = vmul.f32 %v218, %v235
        %v240 = vlaneseq
        %v241 = vshrl.u32 %v240, 7
        %v242 = vsub.s32 0, %v241
        %v243 = vrot.slane %v236, %v242
        %v245 = vmul.f32 %v238, %v243
        %v247 = vlaneseq
        %v248 = vshrl.u32 %v247, 7
        %v249 = vsub.s32 0, %v248
        %v250 = vrot.slane %v237, %v249
        %v252 = vadd.f32 %v245, %v250
        %253 = vst.msk [vmem:[%s210] sm:$0xff] %vm212, %v252
        %s254 = sand.u32 %s97, 1
        %s255 = scalar_lea.sflag [#allocation4], %s254
        %s256 = sand.u32 %s97, 1
        %s257 = smul.addr %s256, 8
        %s258 = scalar_lea.vmem [#allocation8], %s257
        // Predicated region
        $region45: #{tpu_custom_call.1} parent=31 // pred_check
          %p259 = pneg %p107
        $region46: #{tpu_custom_call.1} parent=31 // pred_check_branch
          %261 = sbr.rel (%p259) target = $region48
        $region47: #{tpu_custom_call.1} parent=31 // pred_region
          %s263 = ssub.s32 128, 128
          %264 = vsyncadd %s255, %s263
          %s265 = smul.addr %s21, 128
          %s266 = scalar_lea.hbm %s3, %s265
          %s268 = sshll.u32 %s258, 4
          %s269 = int_to_ptr.vmem [resolvable:$true] %s268
          %271 = dma.vmem_to_hbm [thread:$0]  %s269, 128, %s266, %s255
        $region48: #{tpu_custom_call.1} parent=31 // pred_fallthru
          _
      $region32: #{tpu_custom_call.1} parent=5 // pred_fallthru
        _
      %p272 = scmp.le.s32.totalorder 2, %s16
      // Predicated region
      $region49: #{tpu_custom_call.1} parent=5 // pred_check
        %p273 = pneg %p272
      $region50: #{tpu_custom_call.1} parent=5 // pred_check_branch
        %275 = sbr.rel (%p273) target = $region52
      $region51: #{tpu_custom_call.1} parent=5 // pred_region
        %s276 = ssub.s32 %s16, 2
        // Predicated region
        $region53: #{tpu_custom_call.1} parent=51 // pred_check
          %p277 = pneg %p113
        $region54: #{tpu_custom_call.1} parent=51 // pred_check_branch
          %279 = sbr.rel (%p277) target = $region56
        $region55: #{tpu_custom_call.1} parent=51 // pred_region
          %s280 = sand.u32 %s98, 1
          %s281 = scalar_lea.sflag [#allocation4], %s280
          %s282 = sand.u32 %s98, 1
          %s283 = smul.addr %s282, 8
          %s284 = scalar_lea.vmem [#allocation8], %s283
          %285 = dma.done %s281, 128
        $region56: #{tpu_custom_call.1} parent=51 // pred_fallthru
          _
      $region52: #{tpu_custom_call.1} parent=5 // pred_fallthru
        _
    $region6: #{tpu_custom_call.1} parent=1 // loop_footer
      %s20 = sadd.s32 1, %s16
    $region7: #{tpu_custom_call.1} parent=1 // loop_footer_branch
      %15 = sbr.rel target = $region3
    $region8: #{tpu_custom_call.1} parent=1 // loop_exit
      _
    %286 = vsyncpa [#allocation3], 1
    %s287 = scalar_lea.sflag [#allocation3], 1
    %288 = vsyncpa %s287, 1
    %289 = vsyncpa [#allocation6], 1
    %290 = vsyncpa [#allocation4], 1
    %s291 = scalar_lea.sflag [#allocation4], 1
    %292 = vsyncpa %s291, 1

</llo_original>
